<compile_context>
chip_gen: v6e
topology: v6e:2x2x1
jax: 0.10.0
libtpu: 0.0.40
codegen_flags: <defaults>
</compile_context>

<pallas_src>
import functools

import jax
import jax.numpy as jnp
from jax.experimental import pallas as pl
from jax.experimental.pallas import tpu as pltpu


# ----------------------------------------------------------------------------
# Fused kernel: one batch-chunk (Bt outputs + Bt targets) per grid step.
#   x_ref : (1, 2*Bt, H, KH*W*C)  bf16 im2row rows (outputs first, then targets)
#   t1_ref: (KH*W*C,  W*C1) bf16   t2_ref: (KH*W*C1, W*C2) bf16   (block-Toeplitz, KH folded)
#   b1/b2 : (1, W*C{1,2}) f32 row-tiled biases
#   s1/s2 : (1, 1, W*C{1,2}) f32 per-chunk lane-wise SSE partials
#   fp_ref: VMEM scratch (2*Bt, H+2, W*C1) f32, zero-bordered layer-1 features
# ----------------------------------------------------------------------------
def _content_loss_kernel(x_ref, t1_ref, b1_ref, t2_ref, b2_ref,
                         s1_ref, s2_ref, fp_ref, *, Bt, H, KH, WC, WC1, WC2):
    M = 2 * Bt * H

    # ---- layer 1: single MXU matmul, M = 2*Bt*H, K = KH*W*C (im2row built in wrapper)
    lhs1 = x_ref[0].reshape(M, KH * WC)                               # bf16
    f1 = jnp.dot(lhs1, t1_ref[...], preferred_element_type=jnp.float32)
    f1 = jnp.maximum(f1 + b1_ref[...], 0.0)                           # f32 (M, W*C1)
    f1 = f1.reshape(2 * Bt, H, WC1)

    # layer-1 SSE partial: reduce chunk+rows only, keep the lane axis (reduced in wrapper)
    d1 = f1[:Bt] - f1[Bt:]
    s1_ref[...] = jnp.sum(d1 * d1, axis=(0, 1), keepdims=True)        # (1, 1, W*C1)

    # ---- layer 2: zero-bordered scratch gives per-image SAME row padding,
    #      KH folded into a single K = KH*W*C1 matmul.
    zrow = jnp.zeros((2 * Bt, 1, WC1), jnp.float32)
    fp_ref[:, 0:1, :] = zrow
    fp_ref[:, H + 1:H + 2, :] = zrow
    fp_ref[:, 1:H + 1, :] = f1
    lhs2 = jnp.concatenate([fp_ref[:, kh:kh + H, :] for kh in range(KH)], axis=-1)
    lhs2 = lhs2.astype(jnp.bfloat16).reshape(M, KH * WC1)
    f2 = jnp.dot(lhs2, t2_ref[...], preferred_element_type=jnp.float32)
    f2 = jnp.maximum(f2 + b2_ref[...], 0.0)                           # f32 (M, W*C2)
    f2 = f2.reshape(2 * Bt, H, WC2)

    d2 = f2[:Bt] - f2[Bt:]
    s2_ref[...] = jnp.sum(d2 * d2, axis=(0, 1), keepdims=True)        # (1, 1, W*C2)


# ----------------------------------------------------------------------------
# Wrapper-side weight / input preprocessing (one-time XLA glue).
# ----------------------------------------------------------------------------
def make_row_toeplitz(w, W):
    """w: (KH, KW, Cin, Cout) HWIO -> T: (KH, W*Cin, W*Cout) block-Toeplitz.

    T[kh, wi*Cin+ci, wo*Cout+co] = w[kh, wi-wo+KW//2, ci, co] if in-range else 0,
    so (padded row h+kh of x) @ T[kh] performs the kw sweep of a SAME conv.
    """
    KH, KW, Cin, Cout = w.shape
    PW = KW // 2
    wi = jnp.arange(W)[:, None]
    wo = jnp.arange(W)[None, :]
    kw = wi - wo + PW
    valid = (kw >= 0) & (kw < KW)
    g = w[:, jnp.clip(kw, 0, KW - 1)]                                 # (KH, W, W, Cin, Cout)
    g = jnp.where(valid[None, :, :, None, None], g, 0.0)
    return jnp.transpose(g, (0, 1, 3, 2, 4)).reshape(KH, W * Cin, W * Cout)


def make_model_params(key, cin=4, c1=8, c2=8):
    k1, k2, k3, k4 = jax.random.split(key, 4)
    return {
        "w1": jax.random.normal(k1, (3, 3, cin, c1), jnp.float32) * 0.1,
        "b1": jax.random.normal(k2, (c1,), jnp.float32) * 0.1,
        "w2": jax.random.normal(k3, (3, 3, c1, c2), jnp.float32) * 0.1,
        "b2": jax.random.normal(k4, (c2,), jnp.float32) * 0.1,
    }


# ----------------------------------------------------------------------------
# ContentLoss forward (single fused pallas_call)
# ----------------------------------------------------------------------------
def content_loss(params, output_nchw, target_nchw, weights=None, transform=None):
    if transform is not None:
        output_nchw = transform(output_nchw)
        target_nchw = transform(target_nchw)

    B, C, H, W = output_nchw.shape
    KH = params["w1"].shape[0]
    C1 = params["w1"].shape[-1]
    C2 = params["w2"].shape[-1]
    WC, WC1, WC2 = W * C, W * C1, W * C2

    # batch-chunk size: pack M = 2*Bt*H rows per matmul (TODO(synk): cap Bt by VMEM at large H/W)
    Bt = next(bt for bt in (8, 4, 2, 1) if B % bt == 0)
    G = B // Bt

    # NCHW -> lane-dense rows -> row-padded im2row (B, H, KH*W*C); all padding done here.
    def im2row(x_nchw):
        x = jnp.transpose(x_nchw, (0, 2, 3, 1)).reshape(B, H, WC)
        zrow = jnp.zeros((B, 1, WC), x.dtype)
        xp = jnp.concatenate([zrow, x, zrow], axis=1)                 # (B, H+2, W*C)
        return jnp.concatenate([xp[:, kh:kh + H, :] for kh in range(KH)], axis=-1)

    xo = im2row(output_nchw)
    xt = im2row(target_nchw)
    # chunk g holds Bt output images followed by the matching Bt target images
    x_pair = jnp.concatenate(
        [xo.reshape(G, Bt, H, KH * WC), xt.reshape(G, Bt, H, KH * WC)],
        axis=1).astype(jnp.bfloat16)                                  # (G, 2*Bt, H, KH*W*C)

    t1 = make_row_toeplitz(params["w1"], W).reshape(KH * WC, WC1).astype(jnp.bfloat16)
    t2 = make_row_toeplitz(params["w2"], W).reshape(KH * WC1, WC2).astype(jnp.bfloat16)
    b1r = jnp.tile(params["b1"], W).reshape(1, WC1).astype(jnp.float32)
    b2r = jnp.tile(params["b2"], W).reshape(1, WC2).astype(jnp.float32)

    kernel = functools.partial(_content_loss_kernel,
                               Bt=Bt, H=H, KH=KH, WC=WC, WC1=WC1, WC2=WC2)
    s1, s2 = pl.pallas_call(
        kernel,
        out_shape=(jax.ShapeDtypeStruct((G, 1, WC1), jnp.float32),
                   jax.ShapeDtypeStruct((G, 1, WC2), jnp.float32)),
        grid_spec=pltpu.PrefetchScalarGridSpec(
            num_scalar_prefetch=0,
            grid=(G,),
            in_specs=[
                pl.BlockSpec((1, 2 * Bt, H, KH * WC), lambda g: (g, 0, 0, 0)),
                pl.BlockSpec(t1.shape, lambda g: (0, 0)),             # resident weights
                pl.BlockSpec((1, WC1), lambda g: (0, 0)),
                pl.BlockSpec(t2.shape, lambda g: (0, 0)),
                pl.BlockSpec((1, WC2), lambda g: (0, 0)),
            ],
            out_specs=[
                pl.BlockSpec((1, 1, WC1), lambda g: (g, 0, 0)),       # per-chunk partials
                pl.BlockSpec((1, 1, WC2), lambda g: (g, 0, 0)),
            ],
            scratch_shapes=[pltpu.VMEM((2 * Bt, H + 2, WC1), jnp.float32)],
        ),
        compiler_params=pltpu.CompilerParams(
            dimension_semantics=("parallel",),                        # no cross-step state
            vmem_limit_bytes=32 * 1024 * 1024),
    )(x_pair, t1, b1r, t2, b2r)

    loss1 = jnp.sum(s1) / float(B * H * W * C1)
    loss2 = jnp.sum(s2) / float(B * H * W * C2)
    per_layer = [(0, "feat0", loss1), (1, "feat1", loss2)]

    total = jnp.float32(0.0)
    for i, (_, _, l) in enumerate(per_layer):
        total = total + (l * weights[i] if weights is not None else l)
    return total, per_layer


# ----------------------------------------------------------------------------
# Pure-JAX reference (loose numerical self-check; kernel uses bf16 MXU operands).
# ----------------------------------------------------------------------------
def _reference_content_loss(params, output_nchw, target_nchw, weights=None):
    def conv(x, w, b):
        dn = jax.lax.conv_dimension_numbers(x.shape, w.shape, ("NHWC", "HWIO", "NHWC"))
        y = jax.lax.conv_general_dilated(x, w, (1, 1), "SAME", dimension_numbers=dn,
                                         precision=jax.lax.Precision.HIGHEST)
        return jnp.maximum(y + b, 0.0)

    def features(x_nchw):
        x = jnp.transpose(x_nchw, (0, 2, 3, 1))
        f0 = conv(x, params["w1"], params["b1"])
        f1 = conv(f0, params["w2"], params["b2"])
        return {"feat0": f0, "feat1": f1}

    fo, ft = features(output_nchw), features(target_nchw)
    total = jnp.float32(0.0)
    for i, k in enumerate(sorted(fo)):
        l = jnp.mean((fo[k] - ft[k]) ** 2)
        total = total + (l * weights[i] if weights is not None else l)
    return total


if __name__ == "__main__":
    key = jax.random.PRNGKey(0)
    kp, ko, kt = jax.random.split(key, 3)

    B, C, H, W = 2, 4, 16, 16
    params = make_model_params(kp, cin=C, c1=8, c2=8)
    output = jax.random.normal(ko, (B, C, H, W), jnp.float32)
    target = jax.random.normal(kt, (B, C, H, W), jnp.float32)
    weights = [1.0, 0.5]

    total, per_layer = content_loss(params, output, target, weights=weights)
    total = jax.block_until_ready(total)
    for i, k, loss in per_layer:
        print(i, k, float(loss))
    print("total_loss:", float(total))

    # loose numerical self-check (bf16 MXU operands vs f32 HIGHEST reference)
    ref_total = _reference_content_loss(params, output, target, weights=weights)
    assert jnp.allclose(total, ref_total, rtol=2e-2, atol=1e-4), (float(total), float(ref_total))

    print("KERNEL_OK")
</pallas_src>

<mosaic_0001>
module attributes {stable_mosaic.version = 11 : i64} {
  func.func @_content_loss_kernel(%arg0: i32, %arg1: memref<1x4x16x192xbf16, #tpu.memory_space<vmem>>, %arg2: memref<192x128xbf16, #tpu.memory_space<vmem>>, %arg3: memref<1x128xf32, #tpu.memory_space<vmem>>, %arg4: memref<384x128xbf16, #tpu.memory_space<vmem>>, %arg5: memref<1x128xf32, #tpu.memory_space<vmem>>, %arg6: memref<1x1x128xf32, #tpu.memory_space<vmem>>, %arg7: memref<1x1x128xf32, #tpu.memory_space<vmem>>, %arg8: memref<4x18x128xf32, #tpu.memory_space<vmem>>) attributes {dimension_semantics = [#tpu.dimension_semantics<parallel>], iteration_bounds = array<i64: 1>, scalar_prefetch = 0 : i64, scratch_operands = 1 : i64, tpu.core_type = #tpu.core_type<tc>, window_params = [{transform_indices = @transform_0, window_bounds = array<i64: 1, 4, 16, 192>}, {pipeline_mode = #tpu.pipeline_mode<synchronous>, transform_indices = @transform_1, window_bounds = array<i64: 192, 128>}, {pipeline_mode = #tpu.pipeline_mode<synchronous>, transform_indices = @transform_2, window_bounds = array<i64: 1, 128>}, {pipeline_mode = #tpu.pipeline_mode<synchronous>, transform_indices = @transform_3, window_bounds = array<i64: 384, 128>}, {pipeline_mode = #tpu.pipeline_mode<synchronous>, transform_indices = @transform_4, window_bounds = array<i64: 1, 128>}, {transform_indices = @transform_5, window_bounds = array<i64: 1, 1, 128>}, {transform_indices = @transform_6, window_bounds = array<i64: 1, 1, 128>}]} {
    %c0 = arith.constant 0 : index
    %c0_0 = arith.constant 0 : index
    %c0_1 = arith.constant 0 : index
    %c0_2 = arith.constant 0 : index
    %0 = vector.load %arg1[%c0, %c0_0, %c0_1, %c0_2] : memref<1x4x16x192xbf16, #tpu.memory_space<vmem>>, vector<1x4x16x192xbf16>
    %1 = vector.shape_cast %0 : vector<1x4x16x192xbf16> to vector<4x16x192xbf16>
    %2 = vector.shape_cast %1 : vector<4x16x192xbf16> to vector<64x192xbf16>
    %c0_3 = arith.constant 0 : index
    %c0_4 = arith.constant 0 : index
    %3 = vector.load %arg2[%c0_3, %c0_4] : memref<192x128xbf16, #tpu.memory_space<vmem>>, vector<192x128xbf16>
    %cst = arith.constant dense<0.000000e+00> : vector<64x128xf32>
    %4 = tpu.matmul %2, %3, %cst {dimension_numbers = #tpu.dot_dimension_numbers<[1], [0], [0], [1], [0, 0, 1, 1], [], []>} : vector<64x192xbf16>, vector<192x128xbf16>, vector<64x128xf32> -> vector<64x128xf32>
    %c0_5 = arith.constant 0 : index
    %c0_6 = arith.constant 0 : index
    %5 = vector.load %arg3[%c0_5, %c0_6] : memref<1x128xf32, #tpu.memory_space<vmem>>, vector<1x128xf32>
    %6 = vector.broadcast %5 : vector<1x128xf32> to vector<64x128xf32>
    %7 = arith.addf %4, %6 : vector<64x128xf32>
    %cst_7 = arith.constant 0.000000e+00 : f32
    %8 = vector.broadcast %cst_7 : f32 to vector<64x128xf32>
    %9 = arith.maximumf %7, %8 : vector<64x128xf32>
    %10 = vector.shape_cast %9 : vector<64x128xf32> to vector<4x16x128xf32>
    %11 = vector.extract_strided_slice %10 {offsets = [0, 0, 0], sizes = [2, 16, 128], strides = [1, 1, 1]} : vector<4x16x128xf32> to vector<2x16x128xf32>
    %12 = vector.extract_strided_slice %10 {offsets = [2, 0, 0], sizes = [2, 16, 128], strides = [1, 1, 1]} : vector<4x16x128xf32> to vector<2x16x128xf32>
    %13 = arith.subf %11, %12 : vector<2x16x128xf32>
    %14 = arith.mulf %13, %13 : vector<2x16x128xf32>
    %cst_8 = arith.constant dense<0.000000e+00> : vector<128xf32>
    %15 = vector.multi_reduction <add>, %14, %cst_8 [0, 1] : vector<2x16x128xf32> to vector<128xf32>
    %16 = vector.shape_cast %15 : vector<128xf32> to vector<1x1x128xf32>
    %c0_9 = arith.constant 0 : index
    %c0_10 = arith.constant 0 : index
    %c0_11 = arith.constant 0 : index
    %17 = vector.load %arg6[%c0_9, %c0_10, %c0_11] : memref<1x1x128xf32, #tpu.memory_space<vmem>>, vector<1x1x128xf32>
    tpu.vector_store %arg6[%c0_9, %c0_10, %c0_11], %16 {strides = array<i32>} : memref<1x1x128xf32, #tpu.memory_space<vmem>>, vector<1x1x128xf32>,
    %cst_12 = arith.constant 0.000000e+00 : f32
    %18 = vector.broadcast %cst_12 : f32 to vector<4x1x128xf32>
    %c0_13 = arith.constant 0 : index
    %c0_14 = arith.constant 0 : index
    %c0_15 = arith.constant 0 : index
    %19 = vector.load %arg8[%c0_13, %c0_14, %c0_15] : memref<4x18x128xf32, #tpu.memory_space<vmem>>, vector<4x1x128xf32>
    tpu.vector_store %arg8[%c0_13, %c0_14, %c0_15], %18 {strides = array<i32>} : memref<4x18x128xf32, #tpu.memory_space<vmem>>, vector<4x1x128xf32>,
    %c0_16 = arith.constant 0 : index
    %c17 = arith.constant 17 : index
    %c0_17 = arith.constant 0 : index
    %20 = vector.load %arg8[%c0_16, %c17, %c0_17] : memref<4x18x128xf32, #tpu.memory_space<vmem>>, vector<4x1x128xf32>
    tpu.vector_store %arg8[%c0_16, %c17, %c0_17], %18 {strides = array<i32>} : memref<4x18x128xf32, #tpu.memory_space<vmem>>, vector<4x1x128xf32>,
    %c0_18 = arith.constant 0 : index
    %c1 = arith.constant 1 : index
    %c0_19 = arith.constant 0 : index
    %21 = vector.load %arg8[%c0_18, %c1, %c0_19] : memref<4x18x128xf32, #tpu.memory_space<vmem>>, vector<4x16x128xf32>
    tpu.vector_store %arg8[%c0_18, %c1, %c0_19], %10 {strides = array<i32>} : memref<4x18x128xf32, #tpu.memory_space<vmem>>, vector<4x16x128xf32>,
    %c0_20 = arith.constant 0 : index
    %c0_21 = arith.constant 0 : index
    %c0_22 = arith.constant 0 : index
    %22 = vector.load %arg8[%c0_20, %c0_21, %c0_22] : memref<4x18x128xf32, #tpu.memory_space<vmem>>, vector<4x16x128xf32>
    %c0_23 = arith.constant 0 : index
    %c1_24 = arith.constant 1 : index
    %c0_25 = arith.constant 0 : index
    %23 = vector.load %arg8[%c0_23, %c1_24, %c0_25] : memref<4x18x128xf32, #tpu.memory_space<vmem>>, vector<4x16x128xf32>
    %c0_26 = arith.constant 0 : index
    %c2 = arith.constant 2 : index
    %c0_27 = arith.constant 0 : index
    %24 = vector.load %arg8[%c0_26, %c2, %c0_27] : memref<4x18x128xf32, #tpu.memory_space<vmem>>, vector<4x16x128xf32>
    %25 = tpu.concatenate %22, %23, %24 in 2 : vector<4x16x128xf32>, vector<4x16x128xf32>, vector<4x16x128xf32> -> vector<4x16x384xf32>
    %26 = arith.truncf %25 : vector<4x16x384xf32> to vector<4x16x384xbf16>
    %27 = vector.shape_cast %26 : vector<4x16x384xbf16> to vector<64x384xbf16>
    %c0_28 = arith.constant 0 : index
    %c0_29 = arith.constant 0 : index
    %28 = vector.load %arg4[%c0_28, %c0_29] : memref<384x128xbf16, #tpu.memory_space<vmem>>, vector<384x128xbf16>
    %cst_30 = arith.constant dense<0.000000e+00> : vector<64x128xf32>
    %29 = tpu.matmul %27, %28, %cst_30 {dimension_numbers = #tpu.dot_dimension_numbers<[1], [0], [0], [1], [0, 0, 1, 1], [], []>} : vector<64x384xbf16>, vector<384x128xbf16>, vector<64x128xf32> -> vector<64x128xf32>
    %c0_31 = arith.constant 0 : index
    %c0_32 = arith.constant 0 : index
    %30 = vector.load %arg5[%c0_31, %c0_32] : memref<1x128xf32, #tpu.memory_space<vmem>>, vector<1x128xf32>
    %31 = vector.broadcast %30 : vector<1x128xf32> to vector<64x128xf32>
    %32 = arith.addf %29, %31 : vector<64x128xf32>
    %cst_33 = arith.constant 0.000000e+00 : f32
    %33 = vector.broadcast %cst_33 : f32 to vector<64x128xf32>
    %34 = arith.maximumf %32, %33 : vector<64x128xf32>
    %35 = vector.shape_cast %34 : vector<64x128xf32> to vector<4x16x128xf32>
    %36 = vector.extract_strided_slice %35 {offsets = [0, 0, 0], sizes = [2, 16, 128], strides = [1, 1, 1]} : vector<4x16x128xf32> to vector<2x16x128xf32>
    %37 = vector.extract_strided_slice %35 {offsets = [2, 0, 0], sizes = [2, 16, 128], strides = [1, 1, 1]} : vector<4x16x128xf32> to vector<2x16x128xf32>
    %38 = arith.subf %36, %37 : vector<2x16x128xf32>
    %39 = arith.mulf %38, %38 : vector<2x16x128xf32>
    %cst_34 = arith.constant dense<0.000000e+00> : vector<128xf32>
    %40 = vector.multi_reduction <add>, %39, %cst_34 [0, 1] : vector<2x16x128xf32> to vector<128xf32>
    %41 = vector.shape_cast %40 : vector<128xf32> to vector<1x1x128xf32>
    %c0_35 = arith.constant 0 : index
    %c0_36 = arith.constant 0 : index
    %c0_37 = arith.constant 0 : index
    %42 = vector.load %arg7[%c0_35, %c0_36, %c0_37] : memref<1x1x128xf32, #tpu.memory_space<vmem>>, vector<1x1x128xf32>
    tpu.vector_store %arg7[%c0_35, %c0_36, %c0_37], %41 {strides = array<i32>} : memref<1x1x128xf32, #tpu.memory_space<vmem>>, vector<1x1x128xf32>,
    return
  }
  func.func @transform_0(%arg0: i32) -> (i32, i32, i32, i32) {
    %c0_i32 = arith.constant 0 : i32
    %c0_i32_0 = arith.constant 0 : i32
    %c0_i32_1 = arith.constant 0 : i32
    %c0_i32_2 = arith.constant 0 : i32
    return %arg0, %c0_i32, %c0_i32_0, %c0_i32_1 : i32, i32, i32, i32
  }
  func.func @transform_1(%arg0: i32) -> (i32, i32) {
    %c0_i32 = arith.constant 0 : i32
    %c0_i32_0 = arith.constant 0 : i32
    %c0_i32_1 = arith.constant 0 : i32
    return %c0_i32, %c0_i32_0 : i32, i32
  }
  func.func @transform_2(%arg0: i32) -> (i32, i32) {
    %c0_i32 = arith.constant 0 : i32
    %c0_i32_0 = arith.constant 0 : i32
    %c0_i32_1 = arith.constant 0 : i32
    return %c0_i32, %c0_i32_0 : i32, i32
  }
  func.func @transform_3(%arg0: i32) -> (i32, i32) {
    %c0_i32 = arith.constant 0 : i32
    %c0_i32_0 = arith.constant 0 : i32
    %c0_i32_1 = arith.constant 0 : i32
    return %c0_i32, %c0_i32_0 : i32, i32
  }
  func.func @transform_4(%arg0: i32) -> (i32, i32) {
    %c0_i32 = arith.constant 0 : i32
    %c0_i32_0 = arith.constant 0 : i32
    %c0_i32_1 = arith.constant 0 : i32
    return %c0_i32, %c0_i32_0 : i32, i32
  }
  func.func @transform_5(%arg0: i32) -> (i32, i32, i32) {
    %c0_i32 = arith.constant 0 : i32
    %c0_i32_0 = arith.constant 0 : i32
    %c0_i32_1 = arith.constant 0 : i32
    return %arg0, %c0_i32, %c0_i32_0 : i32, i32, i32
  }
  func.func @transform_6(%arg0: i32) -> (i32, i32, i32) {
    %c0_i32 = arith.constant 0 : i32
    %c0_i32_0 = arith.constant 0 : i32
    %c0_i32_1 = arith.constant 0 : i32
    return %arg0, %c0_i32, %c0_i32_0 : i32, i32, i32
  }
}

</mosaic_0001>

<llo_original>
// kernel: tpu_custom_call.1
$region0: #{tpu_custom_call.1}
  #allocation0 [shape = 'u32[]', space=smem, size = 0x4, offset = 0x4, fixed_abs, tag = 'smem constant byte address 0x4 - core index']
  #allocation1 [shape = 'u32[144,128]{1,0:T(1,128)}', space=vmem, size = 0x12000, scoped, tag = 'internal scratch']
  #allocation2 [shape = 'f32[4,18,128]{2,1,0:T(8,128)}', space=vmem, size = 0xc000, scoped, tag = 'scratch operand']
  %s0 = inlined_call_operand.hbm [shape: bf16[1,4,16,192], index: 0, kind: input, shape index: {}]
  %s1 = inlined_call_operand.hbm [shape: bf16[192,128], index: 1, kind: input, shape index: {}]
  %s2 = inlined_call_operand.vmem [shape: f32[1,128], index: 2, kind: input, shape index: {}]
  %s3 = inlined_call_operand.hbm [shape: bf16[384,128], index: 3, kind: input, shape index: {}]
  %s4 = inlined_call_operand.vmem [shape: f32[1,128], index: 4, kind: input, shape index: {}]
  %s5 = inlined_call_operand.hbm [shape: f32[1,1,128], index: 5, kind: output, shape index: {0}]
  %s6 = inlined_call_operand.hbm [shape: f32[1,1,128], index: 6, kind: output, shape index: {1}]
  %7 = xla_tuple %s5, %s6
  %s8 = sld [smem:[#allocation0]]
  $region50: #{tpu_custom_call.1} parent=0
    _
  %s10 = ssub.s32 1, %s8
  %s11 = scalar_select 0, %s10, %s8
  $region1: #{tpu_custom_call.1} parent=0
    #allocation3 [shape = 'u8[32768]{0}', space=vmem, size = 0x8000, scoped, tag = 'input window, operand 0, single buffered']
    #allocation4 [shape = 's32[1]{0}', space=sflag, size = 0x4, scoped, tag = 'scoped memory for tpu_custom_call.1']
    #allocation5 [shape = 's32[1]{0}', space=sflag, size = 0x4, scoped, tag = 'scoped memory for tpu_custom_call.1']
    #allocation6 [shape = 'u8[49152]{0}', space=vmem, size = 0xc000, scoped, tag = 'input window, operand 1, single buffered']
    #allocation7 [shape = 's32[1]{0}', space=sflag, size = 0x4, scoped, tag = 'scoped memory for tpu_custom_call.1']
    #allocation8 [shape = 'u8[98304]{0}', space=vmem, size = 0x18000, scoped, tag = 'input window, operand 3, single buffered']
    #allocation9 [shape = 'u8[512]{0}', space=vmem, size = 0x400, scoped, tag = 'output window, operand 0, single buffered']
    #allocation10 [shape = 'u8[512]{0}', space=vmem, size = 0x400, scoped, tag = 'output window, operand 1, single buffered']
    #allocation11 [shape = 's32[1]{0}', space=sflag, size = 0x4, scoped, tag = 'scoped memory for tpu_custom_call.1']
    %12 = vsyncpa [#allocation4], 0
    %13 = vsyncpa [#allocation7], 0
    %14 = vsyncpa [#allocation5], 0
    %15 = vsyncpa [#allocation11], 0
    // Predicated region
    $region2: #{tpu_custom_call.1} parent=1 // pred_check
      _
    $region3: #{tpu_custom_call.1} parent=1 // pred_check_branch
      %17 = sbr.rel (0) target = $region5
    $region4: #{tpu_custom_call.1} parent=1 // pred_region
      %s19 = ssub.s32 1024, 1024
      %20 = vsyncadd [#allocation4], %s19
      %s21 = sshll.u32 [#allocation3], 4
      %s22 = int_to_ptr.vmem [resolvable:$true] %s21
      %27 = dma.hbm_to_vmem [thread:$0]  %s0, 1024, %s22, [#allocation4], 128, 128, 8
    $region5: #{tpu_custom_call.1} parent=1 // pred_fallthru
      _
    // Predicated region
    $region6: #{tpu_custom_call.1} parent=1 // pred_check
      _
    $region7: #{tpu_custom_call.1} parent=1 // pred_check_branch
      %29 = sbr.rel (0) target = $region9
    $region8: #{tpu_custom_call.1} parent=1 // pred_region
      %s31 = ssub.s32 1536, 1536
      %32 = vsyncadd [#allocation7], %s31
      %s33 = sshll.u32 [#allocation6], 4
      %s34 = int_to_ptr.vmem [resolvable:$true] %s33
      %39 = dma.hbm_to_vmem [thread:$0]  %s1, 1536, %s34, [#allocation7], 64, 64, 4
    $region9: #{tpu_custom_call.1} parent=1 // pred_fallthru
      _
    // Predicated region
    $region10: #{tpu_custom_call.1} parent=1 // pred_check
      _
    $region11: #{tpu_custom_call.1} parent=1 // pred_check_branch
      %41 = sbr.rel (0) target = $region13
    $region12: #{tpu_custom_call.1} parent=1 // pred_region
      _
    $region13: #{tpu_custom_call.1} parent=1 // pred_fallthru
      _
    // Predicated region
    $region14: #{tpu_custom_call.1} parent=1 // pred_check
      _
    $region15: #{tpu_custom_call.1} parent=1 // pred_check_branch
      %43 = sbr.rel (0) target = $region17
    $region16: #{tpu_custom_call.1} parent=1 // pred_region
      %s45 = ssub.s32 3072, 3072
      %46 = vsyncadd [#allocation7], %s45
      %s47 = sshll.u32 [#allocation8], 4
      %s48 = int_to_ptr.vmem [resolvable:$true] %s47
      %53 = dma.hbm_to_vmem [thread:$0]  %s3, 3072, %s48, [#allocation7], 64, 64, 4
    $region17: #{tpu_custom_call.1} parent=1 // pred_fallthru
      _
    // Predicated region
    $region18: #{tpu_custom_call.1} parent=1 // pred_check
      _
    $region19: #{tpu_custom_call.1} parent=1 // pred_check_branch
      %55 = sbr.rel (0) target = $region21
    $region20: #{tpu_custom_call.1} parent=1 // pred_region
      _
    $region21: #{tpu_custom_call.1} parent=1 // pred_fallthru
      _
    // Predicated region
    $region22: #{tpu_custom_call.1} parent=1 // pred_check
      _
    $region23: #{tpu_custom_call.1} parent=1 // pred_check_branch
      %57 = sbr.rel (0) target = $region25
    $region24: #{tpu_custom_call.1} parent=1 // pred_region
      %58 = dma.done [#allocation4], 1024
    $region25: #{tpu_custom_call.1} parent=1 // pred_fallthru
      _
    // Predicated region
    $region26: #{tpu_custom_call.1} parent=1 // pred_check
      _
    $region27: #{tpu_custom_call.1} parent=1 // pred_check_branch
      %60 = sbr.rel (0) target = $region29
    $region28: #{tpu_custom_call.1} parent=1 // pred_region
      %61 = dma.done [#allocation7], 1536
    $region29: #{tpu_custom_call.1} parent=1 // pred_fallthru
      _
    // Predicated region
    $region30: #{tpu_custom_call.1} parent=1 // pred_check
      _
    $region31: #{tpu_custom_call.1} parent=1 // pred_check_branch
      %63 = sbr.rel (0) target = $region33
    $region32: #{tpu_custom_call.1} parent=1 // pred_region
      %64 = dma.done [#allocation7], 3072
    $region33: #{tpu_custom_call.1} parent=1 // pred_fallthru
      _
    %v66 = vld [vmem:[#allocation3] sm:$0xff]
    %v67 = vld [vmem:[#allocation3 + $0x8] sm:$0xff]
    %v68 = vld [vmem:[#allocation3 + $0x10] sm:$0xff]
    %v69 = vld [vmem:[#allocation3 + $0x18] sm:$0xff]
    %v70 = vld [vmem:[#allocation3 + $0x20] sm:$0xff]
    %v71 = vld [vmem:[#allocation3 + $0x28] sm:$0xff]
    %v72 = vld [vmem:[#allocation3 + $0x30] sm:$0xff]
    %v73 = vld [vmem:[#allocation3 + $0x38] sm:$0xff]
    %v74 = vld [vmem:[#allocation6] sm:$0xf]
    %v75 = vld [vmem:[#allocation6 + $0x4] sm:$0xf]
    %v76 = vld [vmem:[#allocation6 + $0x8] sm:$0xf]
    %v77 = vld [vmem:[#allocation6 + $0xc] sm:$0xf]
    %v78 = vld [vmem:[#allocation6 + $0x10] sm:$0xf]
    %v79 = vld [vmem:[#allocation6 + $0x14] sm:$0xf]
    %v80 = vld [vmem:[#allocation6 + $0x18] sm:$0xf]
    %v81 = vld [vmem:[#allocation6 + $0x1c] sm:$0xf]
    %v82 = vld [vmem:[#allocation6 + $0x20] sm:$0xf]
    %v83 = vld [vmem:[#allocation6 + $0x24] sm:$0xf]
    %v84 = vld [vmem:[#allocation6 + $0x28] sm:$0xf]
    %v85 = vld [vmem:[#allocation6 + $0x2c] sm:$0xf]
    %v86 = vld [vmem:[#allocation6 + $0x30] sm:$0xf]
    %v87 = vld [vmem:[#allocation6 + $0x34] sm:$0xf]
    %v88 = vld [vmem:[#allocation6 + $0x38] sm:$0xf]
    %v89 = vld [vmem:[#allocation6 + $0x3c] sm:$0xf]
    %v90 = vld [vmem:[#allocation6 + $0x40] sm:$0xf]
    %v91 = vld [vmem:[#allocation6 + $0x44] sm:$0xf]
    %v92 = vld [vmem:[#allocation6 + $0x48] sm:$0xf]
    %v93 = vld [vmem:[#allocation6 + $0x4c] sm:$0xf]
    %v94 = vld [vmem:[#allocation6 + $0x50] sm:$0xf]
    %v95 = vld [vmem:[#allocation6 + $0x54] sm:$0xf]
    %v96 = vld [vmem:[#allocation6 + $0x58] sm:$0xf]
    %v97 = vld [vmem:[#allocation6 + $0x5c] sm:$0xf]
    %v98 = vld [vmem:[%s2] sm:$0x1]
    %v100 = vlaneseq
    %v101 = vshrl.u32 %v100, 7
    %v102 = vsub.s32 0, %v101
    %v103 = vrot.slane %v98, %v102
    %v113 = vunpack.c.l.b16 %v66
    %v114 = vunpack.c.h.b16 %v66
    %v115 = vunpack.c.l.b16 %v67
    %v116 = vunpack.c.h.b16 %v67
    %v117 = vunpack.c.l.b16 %v68
    %v118 = vunpack.c.h.b16 %v68
    %v119 = vunpack.c.l.b16 %v69
    %v120 = vunpack.c.h.b16 %v69
    %v121 = vunpack.c.l.b16 %v70
    %v122 = vunpack.c.h.b16 %v70
    %v123 = vunpack.c.l.b16 %v71
    %v124 = vunpack.c.h.b16 %v71
    %v125 = vunpack.c.l.b16 %v72
    %v126 = vunpack.c.h.b16 %v72
    %v127 = vunpack.c.l.b16 %v73
    %v128 = vunpack.c.h.b16 %v73
    %v129 = vpack.c.b16 %v115, %v113
    %v130 = vpack.c.b16 %v116, %v114
    %v131 = vpack.c.b16 %v119, %v117
    %v132 = vpack.c.b16 %v120, %v118
    %v133 = vpack.c.b16 %v123, %v121
    %v134 = vpack.c.b16 %v124, %v122
    %v135 = vpack.c.b16 %v127, %v125
    %v136 = vpack.c.b16 %v128, %v126
    %v165 = vunpack.c.l.b16 %v74
    %v166 = vunpack.c.l.b16 %v75
    %v167 = vunpack.c.l.b16 %v76
    %v168 = vunpack.c.l.b16 %v77
    %v169 = vunpack.c.l.b16 %v78
    %v170 = vunpack.c.l.b16 %v79
    %v171 = vunpack.c.l.b16 %v80
    %v172 = vunpack.c.l.b16 %v81
    %v173 = vunpack.c.l.b16 %v82
    %v174 = vunpack.c.l.b16 %v83
    %v175 = vunpack.c.l.b16 %v84
    %v176 = vunpack.c.l.b16 %v85
    %v177 = vunpack.c.l.b16 %v86
    %v178 = vunpack.c.l.b16 %v87
    %v179 = vunpack.c.l.b16 %v88
    %v180 = vunpack.c.l.b16 %v89
    %v181 = vunpack.c.l.b16 %v90
    %v182 = vunpack.c.l.b16 %v91
    %v183 = vunpack.c.l.b16 %v92
    %v184 = vunpack.c.l.b16 %v93
    %v185 = vunpack.c.l.b16 %v94
    %v186 = vunpack.c.l.b16 %v95
    %v187 = vunpack.c.l.b16 %v96
    %v188 = vunpack.c.l.b16 %v97
    %v189 = vpack.c.b16 %v166, %v165
    %v190 = vpack.c.b16 %v168, %v167
    %v191 = vpack.c.b16 %v170, %v169
    %v192 = vpack.c.b16 %v172, %v171
    %v193 = vpack.c.b16 %v174, %v173
    %v194 = vpack.c.b16 %v176, %v175
    %v195 = vpack.c.b16 %v178, %v177
    %v196 = vpack.c.b16 %v180, %v179
    %v197 = vpack.c.b16 %v182, %v181
    %v198 = vpack.c.b16 %v184, %v183
    %v199 = vpack.c.b16 %v186, %v185
    %v200 = vpack.c.b16 %v188, %v187
    %vm213 = vcmask 523264
    %v215 = vsel %vm213, %v130, 0
    %v218 = vsel %vm213, %v132, 0
    %v221 = vsel %vm213, %v134, 0
    %v224 = vsel %vm213, %v136, 0
    %226 = vmatprep.subr.bf16.mxu0 0
    %227 = vmatpush1.bf16.msra.mxu0 %v196
    %228 = vmatprep.subr.bf16.mxu0 0
    %229 = vmatpush1.bf16.msra.mxu0 %v195
    %230 = vmatprep.subr.bf16.mxu0 0
    %231 = vmatpush1.bf16.msra.mxu0 %v194
    %232 = vmatprep.subr.bf16.mxu0 0
    %233 = vmatpush1.bf16.msra.mxu0 %v193
    %234 = vmatprep.subr.bf16.mxu0 0
    %235 = vmatpush1.bf16.msra.mxu0 %v192
    %236 = vmatprep.subr.bf16.mxu0 0
    %237 = vmatpush1.bf16.msra.mxu0 %v191
    %238 = vmatprep.subr.bf16.mxu0 0
    %239 = vmatpush1.bf16.msra.mxu0 %v190
    %240 = vmatprep.subr.bf16.mxu0 0
    %241 = vmatpush1.bf16.msra.mxu0 %v189
    %242 = vmatprep.subr.bf16.mxu0 0
    %243 = vmatpush2.bf16.msra.mxu0 0
    %244 = vmatprep.subr.bf16.mxu0 0
    %245 = vmatpush2.bf16.msra.mxu0 0
    %246 = vmatprep.subr.bf16.mxu0 0
    %247 = vmatpush2.bf16.msra.mxu0 0
    %248 = vmatprep.subr.bf16.mxu0 0
    %249 = vmatpush2.bf16.msra.mxu0 0
    %250 = vmatprep.subr.bf16.mxu0 0
    %251 = vmatpush2.bf16.msra.mxu0 %v200
    %252 = vmatprep.subr.bf16.mxu0 0
    %253 = vmatpush2.bf16.msra.mxu0 %v199
    %254 = vmatprep.subr.bf16.mxu0 0
    %255 = vmatpush2.bf16.msra.mxu0 %v198
    %256 = vmatprep.subr.bf16.mxu0 0
    %257 = vmatpush2.bf16.msra.mxu0 %v197
    %258 = vmatprep.mubr.bf16.mxu0 %v215
    %259 = vmatmul.mubr.bf16.gmra.mxu0 %v129
    %v260 = vpop.f32.mrf.mxu0
    %v261 = vadd.f32 %v103, %v260
    %v262 = vpop.f32.mrf.mxu0
    %v263 = vpop.f32.mrf.mxu0
    %v264 = vadd.f32 %v103, %v263
    %v265 = vpop.f32.mrf.mxu0
    %266 = vmatprep.mubr.bf16.mxu0 %v218
    %267 = vmatmul.mubr.bf16.gmra.mxu0 %v131
    %v268 = vpop.f32.mrf.mxu0
    %v269 = vadd.f32 %v103, %v268
    %v270 = vpop.f32.mrf.mxu0
    %v271 = vpop.f32.mrf.mxu0
    %v272 = vadd.f32 %v103, %v271
    %v273 = vpop.f32.mrf.mxu0
    %274 = vmatprep.mubr.bf16.mxu0 %v221
    %275 = vmatmul.mubr.bf16.gmra.mxu0 %v133
    %v276 = vpop.f32.mrf.mxu0
    %v277 = vadd.f32 %v103, %v276
    %v278 = vpop.f32.mrf.mxu0
    %v279 = vpop.f32.mrf.mxu0
    %v280 = vadd.f32 %v103, %v279
    %v281 = vpop.f32.mrf.mxu0
    %282 = vmatprep.mubr.bf16.mxu0 %v224
    %283 = vmatmul.mubr.bf16.gmra.mxu0 %v135
    %v284 = vpop.f32.mrf.mxu0
    %v285 = vadd.f32 %v103, %v284
    %v286 = vpop.f32.mrf.mxu0
    %v287 = vpop.f32.mrf.mxu0
    %v288 = vadd.f32 %v103, %v287
    %v289 = vpop.f32.mrf.mxu0
    %290 = vdwg.mxu0
    %v291 = vmax.f32 %v261, 0.0
    %v292 = vmax.f32 %v264, 0.0
    %v293 = vmax.f32 %v269, 0.0
    %v294 = vmax.f32 %v272, 0.0
    %v295 = vmax.f32 %v277, 0.0
    %v296 = vmax.f32 %v280, 0.0
    %v297 = vmax.f32 %v285, 0.0
    %v298 = vmax.f32 %v288, 0.0
    %v299 = vsub.f32 %v291, %v295
    %v300 = vsub.f32 %v292, %v296
    %v301 = vsub.f32 %v293, %v297
    %v302 = vsub.f32 %v294, %v298
    %v303 = vmul.f32 %v299, %v299
    %v304 = vmul.f32 %v300, %v300
    %v305 = vmul.f32 %v301, %v301
    %v306 = vmul.f32 %v302, %v302
    %v307 = vadd.f32 %v303, %v304
    %v308 = vadd.f32 %v307, %v305
    %v309 = vadd.f32 %v308, %v306
    %v310 = vrot.slane %v309, 4
    %v311 = vadd.f32 %v309, %v310
    %v312 = vrot.slane %v311, 2
    %v313 = vadd.f32 %v311, %v312
    %v314 = vrot.slane %v313, 1
    %v315 = vadd.f32 %v313, %v314
    %316 = vst [vmem:[#allocation9] sm:$0x1] %v315
    %317 = vst [vmem:[#allocation2] sm:$0x1] 0.0
    %318 = vst [vmem:[#allocation2 + $0x18] sm:$0x1] 0.0
    %319 = vst [vmem:[#allocation2 + $0x30] sm:$0x1] 0.0
    %320 = vst [vmem:[#allocation2 + $0x48] sm:$0x1] 0.0
    %321 = vst [vmem:[#allocation2 + $0x11] sm:$0x1] 0.0
    %322 = vst [vmem:[#allocation2 + $0x29] sm:$0x1] 0.0
    %323 = vst [vmem:[#allocation2 + $0x41] sm:$0x1] 0.0
    %324 = vst [vmem:[#allocation2 + $0x59] sm:$0x1] 0.0
    %325 = vst [vmem:[#allocation2 + $0x1] sm:$0xff] %v291
    %326 = vst [vmem:[#allocation2 + $0x9] sm:$0xff] %v292
    %327 = vst [vmem:[#allocation2 + $0x19] sm:$0xff] %v293
    %328 = vst [vmem:[#allocation2 + $0x21] sm:$0xff] %v294
    %329 = vst [vmem:[#allocation2 + $0x31] sm:$0xff] %v295
    %330 = vst [vmem:[#allocation2 + $0x39] sm:$0xff] %v296
    %331 = vst [vmem:[#allocation2 + $0x49] sm:$0xff] %v297
    %332 = vst [vmem:[#allocation2 + $0x51] sm:$0xff] %v298
    %v333 = vld [vmem:[#allocation2] sm:$0xff]
    %v334 = vld [vmem:[#allocation2 + $0x8] sm:$0xff]
    %v335 = vld [vmem:[#allocation2 + $0x18] sm:$0xff]
    %v336 = vld [vmem:[#allocation2 + $0x20] sm:$0xff]
    %v337 = vld [vmem:[#allocation2 + $0x30] sm:$0xff]
    %v338 = vld [vmem:[#allocation2 + $0x38] sm:$0xff]
    %v339 = vld [vmem:[#allocation2 + $0x48] sm:$0xff]
    %v340 = vld [vmem:[#allocation2 + $0x50] sm:$0xff]
    %v341 = vld [vmem:[#allocation2 + $0x1] sm:$0xff]
    %v342 = vld [vmem:[#allocation2 + $0x9] sm:$0xff]
    %v343 = vld [vmem:[#allocation2 + $0x19] sm:$0xff]
    %v344 = vld [vmem:[#allocation2 + $0x21] sm:$0xff]
    %v345 = vld [vmem:[#allocation2 + $0x31] sm:$0xff]
    %v346 = vld [vmem:[#allocation2 + $0x39] sm:$0xff]
    %v347 = vld [vmem:[#allocation2 + $0x49] sm:$0xff]
    %v348 = vld [vmem:[#allocation2 + $0x51] sm:$0xff]
    %v349 = vld [vmem:[#allocation2 + $0x2] sm:$0xff]
    %v350 = vld [vmem:[#allocation2 + $0xa] sm:$0xff]
    %v351 = vld [vmem:[#allocation2 + $0x1a] sm:$0xff]
    %v352 = vld [vmem:[#allocation2 + $0x22] sm:$0xff]
    %v353 = vld [vmem:[#allocation2 + $0x32] sm:$0xff]
    %v354 = vld [vmem:[#allocation2 + $0x3a] sm:$0xff]
    %v355 = vld [vmem:[#allocation2 + $0x4a] sm:$0xff]
    %v356 = vld [vmem:[#allocation2 + $0x52] sm:$0xff]
    %v357 = vpack.c.bf16 %v334, %v333
    %v358 = vpack.c.bf16 %v342, %v341
    %v359 = vpack.c.bf16 %v350, %v349
    %v360 = vpack.c.bf16 %v336, %v335
    %v361 = vpack.c.bf16 %v344, %v343
    %v362 = vpack.c.bf16 %v352, %v351
    %v363 = vpack.c.bf16 %v338, %v337
    %v364 = vpack.c.bf16 %v346, %v345
    %v365 = vpack.c.bf16 %v354, %v353
    %v366 = vpack.c.bf16 %v340, %v339
    %v367 = vpack.c.bf16 %v348, %v347
    %v368 = vpack.c.bf16 %v356, %v355
    %v369 = vld [vmem:[#allocation8] sm:$0xf]
    %v370 = vld [vmem:[#allocation8 + $0x4] sm:$0xf]
    %v371 = vld [vmem:[#allocation8 + $0x8] sm:$0xf]
    %v372 = vld [vmem:[#allocation8 + $0xc] sm:$0xf]
    %v373 = vld [vmem:[#allocation8 + $0x10] sm:$0xf]
    %v374 = vld [vmem:[#allocation8 + $0x14] sm:$0xf]
    %v375 = vld [vmem:[#allocation8 + $0x18] sm:$0xf]
    %v376 = vld [vmem:[#allocation8 + $0x1c] sm:$0xf]
    %v377 = vld [vmem:[#allocation8 + $0x20] sm:$0xf]
    %v378 = vld [vmem:[#allocation8 + $0x24] sm:$0xf]
    %v379 = vld [vmem:[#allocation8 + $0x28] sm:$0xf]
    %v380 = vld [vmem:[#allocation8 + $0x2c] sm:$0xf]
    %v381 = vld [vmem:[#allocation8 + $0x30] sm:$0xf]
    %v382 = vld [vmem:[#allocation8 + $0x34] sm:$0xf]
    %v383 = vld [vmem:[#allocation8 + $0x38] sm:$0xf]
    %v384 = vld [vmem:[#allocation8 + $0x3c] sm:$0xf]
    %v385 = vld [vmem:[#allocation8 + $0x40] sm:$0xf]
    %v386 = vld [vmem:[#allocation8 + $0x44] sm:$0xf]
    %v387 = vld [vmem:[#allocation8 + $0x48] sm:$0xf]
    %v388 = vld [vmem:[#allocation8 + $0x4c] sm:$0xf]
    %v389 = vld [vmem:[#allocation8 + $0x50] sm:$0xf]
    %v390 = vld [vmem:[#allocation8 + $0x54] sm:$0xf]
    %v391 = vld [vmem:[#allocation8 + $0x58] sm:$0xf]
    %v392 = vld [vmem:[#allocation8 + $0x5c] sm:$0xf]
    %v393 = vld [vmem:[#allocation8 + $0x60] sm:$0xf]
    %v394 = vld [vmem:[#allocation8 + $0x64] sm:$0xf]
    %v395 = vld [vmem:[#allocation8 + $0x68] sm:$0xf]
    %v396 = vld [vmem:[#allocation8 + $0x6c] sm:$0xf]
    %v397 = vld [vmem:[#allocation8 + $0x70] sm:$0xf]
    %v398 = vld [vmem:[#allocation8 + $0x74] sm:$0xf]
    %v399 = vld [vmem:[#allocation8 + $0x78] sm:$0xf]
    %v400 = vld [vmem:[#allocation8 + $0x7c] sm:$0xf]
    %v401 = vld [vmem:[#allocation8 + $0x80] sm:$0xf]
    %v402 = vld [vmem:[#allocation8 + $0x84] sm:$0xf]
    %v403 = vld [vmem:[#allocation8 + $0x88] sm:$0xf]
    %v404 = vld [vmem:[#allocation8 + $0x8c] sm:$0xf]
    %v405 = vld [vmem:[#allocation8 + $0x90] sm:$0xf]
    %v406 = vld [vmem:[#allocation8 + $0x94] sm:$0xf]
    %v407 = vld [vmem:[#allocation8 + $0x98] sm:$0xf]
    %v408 = vld [vmem:[#allocation8 + $0x9c] sm:$0xf]
    %v409 = vld [vmem:[#allocation8 + $0xa0] sm:$0xf]
    %v410 = vld [vmem:[#allocation8 + $0xa4] sm:$0xf]
    %v411 = vld [vmem:[#allocation8 + $0xa8] sm:$0xf]
    %v412 = vld [vmem:[#allocation8 + $0xac] sm:$0xf]
    %v413 = vld [vmem:[#allocation8 + $0xb0] sm:$0xf]
    %v414 = vld [vmem:[#allocation8 + $0xb4] sm:$0xf]
    %v415 = vld [vmem:[#allocation8 + $0xb8] sm:$0xf]
    %v416 = vld [vmem:[#allocation8 + $0xbc] sm:$0xf]
    %v417 = vld [vmem:[%s4] sm:$0x1]
    %v419 = vlaneseq
    %v420 = vshrl.u32 %v419, 7
    %v421 = vsub.s32 0, %v420
    %v422 = vrot.slane %v417, %v421
    %v472 = vunpack.c.l.b16 %v369
    %v473 = vunpack.c.l.b16 %v370
    %v474 = vunpack.c.l.b16 %v371
    %v475 = vunpack.c.l.b16 %v372
    %v476 = vunpack.c.l.b16 %v373
    %v477 = vunpack.c.l.b16 %v374
    %v478 = vunpack.c.l.b16 %v375
    %v479 = vunpack.c.l.b16 %v376
    %v480 = vunpack.c.l.b16 %v377
    %v481 = vunpack.c.l.b16 %v378
    %v482 = vunpack.c.l.b16 %v379
    %v483 = vunpack.c.l.b16 %v380
    %v484 = vunpack.c.l.b16 %v381
    %v485 = vunpack.c.l.b16 %v382
    %v486 = vunpack.c.l.b16 %v383
    %v487 = vunpack.c.l.b16 %v384
    %v488 = vunpack.c.l.b16 %v385
    %v489 = vunpack.c.l.b16 %v386
    %v490 = vunpack.c.l.b16 %v387
    %v491 = vunpack.c.l.b16 %v388
    %v492 = vunpack.c.l.b16 %v389
    %v493 = vunpack.c.l.b16 %v390
    %v494 = vunpack.c.l.b16 %v391
    %v495 = vunpack.c.l.b16 %v392
    %v496 = vunpack.c.l.b16 %v393
    %v497 = vunpack.c.l.b16 %v394
    %v498 = vunpack.c.l.b16 %v395
    %v499 = vunpack.c.l.b16 %v396
    %v500 = vunpack.c.l.b16 %v397
    %v501 = vunpack.c.l.b16 %v398
    %v502 = vunpack.c.l.b16 %v399
    %v503 = vunpack.c.l.b16 %v400
    %v504 = vunpack.c.l.b16 %v401
    %v505 = vunpack.c.l.b16 %v402
    %v506 = vunpack.c.l.b16 %v403
    %v507 = vunpack.c.l.b16 %v404
    %v508 = vunpack.c.l.b16 %v405
    %v509 = vunpack.c.l.b16 %v406
    %v510 = vunpack.c.l.b16 %v407
    %v511 = vunpack.c.l.b16 %v408
    %v512 = vunpack.c.l.b16 %v409
    %v513 = vunpack.c.l.b16 %v410
    %v514 = vunpack.c.l.b16 %v411
    %v515 = vunpack.c.l.b16 %v412
    %v516 = vunpack.c.l.b16 %v413
    %v517 = vunpack.c.l.b16 %v414
    %v518 = vunpack.c.l.b16 %v415
    %v519 = vunpack.c.l.b16 %v416
    %v520 = vpack.c.b16 %v473, %v472
    %v521 = vpack.c.b16 %v475, %v474
    %v522 = vpack.c.b16 %v477, %v476
    %v523 = vpack.c.b16 %v479, %v478
    %v524 = vpack.c.b16 %v481, %v480
    %v525 = vpack.c.b16 %v483, %v482
    %v526 = vpack.c.b16 %v485, %v484
    %v527 = vpack.c.b16 %v487, %v486
    %v528 = vpack.c.b16 %v489, %v488
    %v529 = vpack.c.b16 %v491, %v490
    %v530 = vpack.c.b16 %v493, %v492
    %v531 = vpack.c.b16 %v495, %v494
    %v532 = vpack.c.b16 %v497, %v496
    %v533 = vpack.c.b16 %v499, %v498
    %v534 = vpack.c.b16 %v501, %v500
    %v535 = vpack.c.b16 %v503, %v502
    %v536 = vpack.c.b16 %v505, %v504
    %v537 = vpack.c.b16 %v507, %v506
    %v538 = vpack.c.b16 %v509, %v508
    %v539 = vpack.c.b16 %v511, %v510
    %v540 = vpack.c.b16 %v513, %v512
    %v541 = vpack.c.b16 %v515, %v514
    %v542 = vpack.c.b16 %v517, %v516
    %v543 = vpack.c.b16 %v519, %v518
    %568 = vmatprep.subr.bf16.mxu0 0
    %569 = vmatpush1.bf16.msra.mxu0 %v527
    %570 = vmatprep.subr.bf16.mxu0 0
    %571 = vmatpush1.bf16.msra.mxu0 %v526
    %572 = vmatprep.subr.bf16.mxu0 0
    %573 = vmatpush1.bf16.msra.mxu0 %v525
    %574 = vmatprep.subr.bf16.mxu0 0
    %575 = vmatpush1.bf16.msra.mxu0 %v524
    %576 = vmatprep.subr.bf16.mxu0 0
    %577 = vmatpush1.bf16.msra.mxu0 %v523
    %578 = vmatprep.subr.bf16.mxu0 0
    %579 = vmatpush1.bf16.msra.mxu0 %v522
    %580 = vmatprep.subr.bf16.mxu0 0
    %581 = vmatpush1.bf16.msra.mxu0 %v521
    %582 = vmatprep.subr.bf16.mxu0 0
    %583 = vmatpush1.bf16.msra.mxu0 %v520
    %584 = vmatprep.subr.bf16.mxu0 0
    %585 = vmatpush2.bf16.msra.mxu0 %v535
    %586 = vmatprep.subr.bf16.mxu0 0
    %587 = vmatpush2.bf16.msra.mxu0 %v534
    %588 = vmatprep.subr.bf16.mxu0 0
    %589 = vmatpush2.bf16.msra.mxu0 %v533
    %590 = vmatprep.subr.bf16.mxu0 0
    %591 = vmatpush2.bf16.msra.mxu0 %v532
    %592 = vmatprep.subr.bf16.mxu0 0
    %593 = vmatpush2.bf16.msra.mxu0 %v531
    %594 = vmatprep.subr.bf16.mxu0 0
    %595 = vmatpush2.bf16.msra.mxu0 %v530
    %596 = vmatprep.subr.bf16.mxu0 0
    %597 = vmatpush2.bf16.msra.mxu0 %v529
    %598 = vmatprep.subr.bf16.mxu0 0
    %599 = vmatpush2.bf16.msra.mxu0 %v528
    %600 = vmatprep.mubr.bf16.mxu0 %v358
    %601 = vmatmul.mubr.bf16.gmra.mxu0 %v357
    %v602 = vpop.f32.mrf.mxu0
    %v603 = vadd.f32 %v422, %v602
    %v604 = vpop.f32.mrf.mxu0
    %v605 = vpop.f32.mrf.mxu0
    %v606 = vadd.f32 %v422, %v605
    %v607 = vpop.f32.mrf.mxu0
    %608 = vmatprep.mubr.bf16.mxu0 %v361
    %609 = vmatmul.mubr.bf16.gmra.mxu0 %v360
    %v610 = vpop.f32.mrf.mxu0
    %v611 = vadd.f32 %v422, %v610
    %v612 = vpop.f32.mrf.mxu0
    %v613 = vpop.f32.mrf.mxu0
    %v614 = vadd.f32 %v422, %v613
    %v615 = vpop.f32.mrf.mxu0
    %616 = vmatprep.mubr.bf16.mxu0 %v364
    %617 = vmatmul.mubr.bf16.gmra.mxu0 %v363
    %v618 = vpop.f32.mrf.mxu0
    %v619 = vadd.f32 %v422, %v618
    %v620 = vpop.f32.mrf.mxu0
    %v621 = vpop.f32.mrf.mxu0
    %v622 = vadd.f32 %v422, %v621
    %v623 = vpop.f32.mrf.mxu0
    %624 = vmatprep.mubr.bf16.mxu0 %v367
    %625 = vmatmul.mubr.bf16.gmra.mxu0 %v366
    %v626 = vpop.f32.mrf.mxu0
    %v627 = vadd.f32 %v422, %v626
    %v628 = vpop.f32.mrf.mxu0
    %v629 = vpop.f32.mrf.mxu0
    %v630 = vadd.f32 %v422, %v629
    %v631 = vpop.f32.mrf.mxu0
    %632 = vdwg.mxu0
    %633 = vmatprep.subr.bf16.mxu0 0
    %634 = vmatpush1.bf16.msra.mxu0 %v543
    %635 = vmatprep.subr.bf16.mxu0 0
    %636 = vmatpush1.bf16.msra.mxu0 %v542
    %637 = vmatprep.subr.bf16.mxu0 0
    %638 = vmatpush1.bf16.msra.mxu0 %v541
    %639 = vmatprep.subr.bf16.mxu0 0
    %640 = vmatpush1.bf16.msra.mxu0 %v540
    %641 = vmatprep.subr.bf16.mxu0 0
    %642 = vmatpush1.bf16.msra.mxu0 %v539
    %643 = vmatprep.subr.bf16.mxu0 0
    %644 = vmatpush1.bf16.msra.mxu0 %v538
    %645 = vmatprep.subr.bf16.mxu0 0
    %646 = vmatpush1.bf16.msra.mxu0 %v537
    %647 = vmatprep.subr.bf16.mxu0 0
    %648 = vmatpush1.bf16.msra.mxu0 %v536
    %649 = vmatprep.subr.bf16.mxu0 0
    %650 = vmatpush2.bf16.msra.mxu0 0
    %651 = vmatprep.subr.bf16.mxu0 0
    %652 = vmatpush2.bf16.msra.mxu0 0
    %653 = vmatprep.subr.bf16.mxu0 0
    %654 = vmatpush2.bf16.msra.mxu0 0
    %655 = vmatprep.subr.bf16.mxu0 0
    %656 = vmatpush2.bf16.msra.mxu0 0
    %657 = vmatprep.subr.bf16.mxu0 0
    %658 = vmatpush2.bf16.msra.mxu0 0
    %659 = vmatprep.subr.bf16.mxu0 0
    %660 = vmatpush2.bf16.msra.mxu0 0
    %661 = vmatprep.subr.bf16.mxu0 0
    %662 = vmatpush2.bf16.msra.mxu0 0
    %663 = vmatprep.subr.bf16.mxu0 0
    %664 = vmatpush2.bf16.msra.mxu0 0
    %665 = vmatprep.mubr.bf16.mxu0 0
    %666 = vmatmul.mubr.bf16.gmra.mxu0 %v359
    %v667 = vpop.f32.mrf.mxu0
    %v668 = vadd.f32 %v603, %v667
    %v669 = vpop.f32.mrf.mxu0
    %v670 = vpop.f32.mrf.mxu0
    %v671 = vadd.f32 %v606, %v670
    %v672 = vpop.f32.mrf.mxu0
    %673 = vmatprep.mubr.bf16.mxu0 0
    %674 = vmatmul.mubr.bf16.gmra.mxu0 %v362
    %v675 = vpop.f32.mrf.mxu0
    %v676 = vadd.f32 %v611, %v675
    %v677 = vpop.f32.mrf.mxu0
    %v678 = vpop.f32.mrf.mxu0
    %v679 = vadd.f32 %v614, %v678
    %v680 = vpop.f32.mrf.mxu0
    %681 = vmatprep.mubr.bf16.mxu0 0
    %682 = vmatmul.mubr.bf16.gmra.mxu0 %v365
    %v683 = vpop.f32.mrf.mxu0
    %v684 = vadd.f32 %v619, %v683
    %v685 = vpop.f32.mrf.mxu0
    %v686 = vpop.f32.mrf.mxu0
    %v687 = vadd.f32 %v622, %v686
    %v688 = vpop.f32.mrf.mxu0
    %689 = vmatprep.mubr.bf16.mxu0 0
    %690 = vmatmul.mubr.bf16.gmra.mxu0 %v368
    %v691 = vpop.f32.mrf.mxu0
    %v692 = vadd.f32 %v627, %v691
    %v693 = vpop.f32.mrf.mxu0
    %v694 = vpop.f32.mrf.mxu0
    %v695 = vadd.f32 %v630, %v694
    %v696 = vpop.f32.mrf.mxu0
    %697 = vdwg.mxu0
    %v698 = vmax.f32 %v668, 0.0
    %v699 = vmax.f32 %v671, 0.0
    %v700 = vmax.f32 %v676, 0.0
    %v701 = vmax.f32 %v679, 0.0
    %v702 = vmax.f32 %v684, 0.0
    %v703 = vmax.f32 %v687, 0.0
    %v704 = vmax.f32 %v692, 0.0
    %v705 = vmax.f32 %v695, 0.0
    %v706 = vsub.f32 %v698, %v702
    %v707 = vsub.f32 %v699, %v703
    %v708 = vsub.f32 %v700, %v704
    %v709 = vsub.f32 %v701, %v705
    %v710 = vmul.f32 %v706, %v706
    %v711 = vmul.f32 %v707, %v707
    %v712 = vmul.f32 %v708, %v708
    %v713 = vmul.f32 %v709, %v709
    %v714 = vadd.f32 %v710, %v711
    %v715 = vadd.f32 %v714, %v712
    %v716 = vadd.f32 %v715, %v713
    %v717 = vrot.slane %v716, 4
    %v718 = vadd.f32 %v716, %v717
    %v719 = vrot.slane %v718, 2
    %v720 = vadd.f32 %v718, %v719
    %v721 = vrot.slane %v720, 1
    %v722 = vadd.f32 %v720, %v721
    %723 = vst [vmem:[#allocation10] sm:$0x1] %v722
    // Predicated region
    $region34: #{tpu_custom_call.1} parent=1 // pred_check
      _
    $region35: #{tpu_custom_call.1} parent=1 // pred_check_branch
      %725 = sbr.rel (0) target = $region37
    $region36: #{tpu_custom_call.1} parent=1 // pred_region
      %s727 = ssub.s32 16, 16
      %728 = vsyncadd [#allocation5], %s727
      %s730 = sshll.u32 [#allocation9], 4
      %s731 = int_to_ptr.vmem [resolvable:$true] %s730
      %733 = dma.vmem_to_hbm [thread:$0]  %s731, 16, %s5, [#allocation5]
    $region37: #{tpu_custom_call.1} parent=1 // pred_fallthru
      _
    // Predicated region
    $region38: #{tpu_custom_call.1} parent=1 // pred_check
      _
    $region39: #{tpu_custom_call.1} parent=1 // pred_check_branch
      %735 = sbr.rel (0) target = $region41
    $region40: #{tpu_custom_call.1} parent=1 // pred_region
      %s737 = ssub.s32 16, 16
      %738 = vsyncadd [#allocation11], %s737
      %s740 = sshll.u32 [#allocation10], 4
      %s741 = int_to_ptr.vmem [resolvable:$true] %s740
      %743 = dma.vmem_to_hbm [thread:$0]  %s741, 16, %s6, [#allocation11]
    $region41: #{tpu_custom_call.1} parent=1 // pred_fallthru
      _
    // Predicated region
    $region42: #{tpu_custom_call.1} parent=1 // pred_check
      _
    $region43: #{tpu_custom_call.1} parent=1 // pred_check_branch
      %745 = sbr.rel (0) target = $region45
    $region44: #{tpu_custom_call.1} parent=1 // pred_region
      %746 = dma.done [#allocation5], 16
    $region45: #{tpu_custom_call.1} parent=1 // pred_fallthru
      _
    // Predicated region
    $region46: #{tpu_custom_call.1} parent=1 // pred_check
      _
    $region47: #{tpu_custom_call.1} parent=1 // pred_check_branch
      %748 = sbr.rel (0) target = $region49
    $region48: #{tpu_custom_call.1} parent=1 // pred_region
      %749 = dma.done [#allocation11], 16
    $region49: #{tpu_custom_call.1} parent=1 // pred_fallthru
      _
    %750 = vsyncpa [#allocation4], 1
    %751 = vsyncpa [#allocation7], 1
    %752 = vsyncpa [#allocation5], 1
    %753 = vsyncpa [#allocation11], 1

</llo_original>
